<compile_context>
chip_gen: v6e
topology: v6e:2x2x1
jax: 0.10.0
libtpu: 0.0.40
codegen_flags: <defaults>
</compile_context>

<pallas_src>
import functools

import jax
import jax.numpy as jnp
from jax import lax
from jax.experimental import pallas as pl
from jax.experimental.pallas import tpu as pltpu


# --------------------------------------------------------------------------
# Small helpers
# --------------------------------------------------------------------------

def _roll(x, shift, axis):
    """pltpu.roll with static shift reduced mod size (skip when it's a no-op)."""
    shift = shift % x.shape[axis]
    if shift == 0:
        return x
    return pltpu.roll(x, shift=shift, axis=axis)


def _vmem_capacity_bytes():
    try:
        return int(pltpu.get_tpu_info().vmem_capacity_bytes)   # 128 MiB v5e/v6e, 64 MiB v7x
    except Exception:
        return 64 << 20                                         # conservative fallback (v7x)


def _working_set_bytes(in_block_bytes, out_block_bytes, f32_block_bytes):
    # Double-buffered in/out blocks + ~6 live f32 temporaries the size of the
    # compute block (x, rolled copies, grads, mag) + slack for masks/misc.
    return 2 * in_block_bytes + 2 * out_block_bytes + 6 * f32_block_bytes + (2 << 20)


def _vmem_limit(ws, cap):
    # >= 32 MiB (v5e scoped default is only 16 MiB), <= capacity - 8 MiB headroom.
    return int(min(max(ws, 32 << 20), cap - (8 << 20)))


def _pick_strip_rows(H, W, isize, osize, usable, max_rows=None):
    """Largest multiple-of-8 divisor of H whose strip working set fits `usable`."""
    best = None
    for th in range(8, H + 1, 8):
        if H % th:
            continue
        if max_rows is not None and th > max_rows:
            continue
        in_b = 3 * th * W * isize + 2 * 3 * 8 * W * isize   # strip + 2 halo blocks
        ws = _working_set_bytes(in_b, 3 * th * W * osize, 3 * th * W * 4)
        if ws <= usable:
            best = th
    return best


# --------------------------------------------------------------------------
# Kernels
# --------------------------------------------------------------------------

def _grad_image_kernel(x_ref, o_ref):
    """Whole image per step. x_ref/o_ref: (1, 3, H, W) blocks (natural layout)."""
    H, W = x_ref.shape[2], x_ref.shape[3]
    f32 = jnp.float32
    # 0/1 border masks, built once from tiny iotas (no modulo, no full-size iota).
    row = lax.broadcasted_iota(jnp.int32, (H, 1), 0)
    col = lax.broadcasted_iota(jnp.int32, (1, W), 1)
    m_dn = (row < H - 1).astype(f32)   # keep x[i+1, j]
    m_up = (row > 0).astype(f32)       # keep x[i-1, j]
    m_rt = (col < W - 1).astype(f32)   # keep x[i, j+1]
    m_lt = (col > 0).astype(f32)       # keep x[i, j-1]
    for c in range(3):                 # static unroll; each plane is lane-dense when W >= 128
        x = x_ref[0, c, :, :].astype(f32)
        grad_v = _roll(x, H - 1, 0) * m_dn - _roll(x, 1, 0) * m_up
        grad_h = _roll(x, W - 1, 1) * m_rt - _roll(x, 1, 1) * m_lt
        o_ref[0, c, :, :] = jnp.sqrt(grad_v * grad_v + grad_h * grad_h + 1e-6).astype(o_ref.dtype)


def _grad_strip_kernel(x_ref, up_ref, dn_ref, o_ref):
    """H-strip per step with a 1-row halo.

    x_ref/o_ref: (1, 3, TH, W) strip blocks.
    up_ref/dn_ref: (1, 3, 8, W) 8-row blocks whose last/first row is the halo
    row just above/below the strip (clamped in-bounds by the index_map; the
    kernel zeroes them at the top/bottom image edges).
    """
    TH, W = x_ref.shape[2], x_ref.shape[3]
    f32 = jnp.float32
    s = pl.program_id(1)
    have_above = (s > 0).astype(f32)                        # scalar 0/1
    have_below = (s < pl.num_programs(1) - 1).astype(f32)
    row = lax.broadcasted_iota(jnp.int32, (TH, 1), 0)
    col = lax.broadcasted_iota(jnp.int32, (1, W), 1)
    not_last = row < TH - 1
    not_first = row > 0
    m_rt = (col < W - 1).astype(f32)
    m_lt = (col > 0).astype(f32)
    for c in range(3):
        x = x_ref[0, c, :, :].astype(f32)                               # (TH, W)
        above = up_ref[0, c, 7:8, :].astype(f32) * have_above           # (1, W): row s*TH - 1 (or 0)
        below = dn_ref[0, c, 0:1, :].astype(f32) * have_below           # (1, W): row (s+1)*TH (or 0)
        x_dn = jnp.where(not_last, _roll(x, TH - 1, 0), below)          # x[i+1, j]
        x_up = jnp.where(not_first, _roll(x, 1, 0), above)              # x[i-1, j]
        grad_v = x_dn - x_up
        grad_h = _roll(x, W - 1, 1) * m_rt - _roll(x, 1, 1) * m_lt
        o_ref[0, c, :, :] = jnp.sqrt(grad_v * grad_v + grad_h * grad_h + 1e-6).astype(o_ref.dtype)


def _grad_flat_kernel(x_ref, o_ref, *, W):
    """Skinny-W path. x_ref/o_ref: (1, B*3, HW) blocks; each row is one
    image-channel flattened to H*W (lane-dense even for W << 128)."""
    HW = x_ref.shape[2]
    f32 = jnp.float32
    f = lax.broadcasted_iota(jnp.int32, (1, HW), 1)   # flat pixel index i*W + j
    col = f % W
    m_dn = (f < HW - W).astype(f32)
    m_up = (f >= W).astype(f32)
    m_rt = (col < W - 1).astype(f32)
    m_lt = (col > 0).astype(f32)
    x = x_ref[0, :, :].astype(f32)                    # (B*3, HW)
    grad_v = _roll(x, HW - W, 1) * m_dn - _roll(x, W, 1) * m_up
    grad_h = _roll(x, HW - 1, 1) * m_rt - _roll(x, 1, 1) * m_lt
    o_ref[0, :, :] = jnp.sqrt(grad_v * grad_v + grad_h * grad_h + 1e-6).astype(o_ref.dtype)


# --------------------------------------------------------------------------
# pallas_call wrappers (one per tiling strategy)
# --------------------------------------------------------------------------

def _run_image(x, N, H, W, out_dtype, cap):
    HW = H * W
    isize = jnp.dtype(x.dtype).itemsize
    ws = _working_set_bytes(3 * HW * isize, 3 * HW * jnp.dtype(out_dtype).itemsize, 3 * HW * 4)
    return pl.pallas_call(
        _grad_image_kernel,
        out_shape=jax.ShapeDtypeStruct((N, 3, H, W), out_dtype),
        grid_spec=pltpu.PrefetchScalarGridSpec(
            num_scalar_prefetch=0,
            grid=(N,),
            # (1, 3, H, W) block: only channels 0..2 are DMA'd even when C > 3.
            in_specs=[pl.BlockSpec((1, 3, H, W), lambda n: (n, 0, 0, 0))],
            out_specs=pl.BlockSpec((1, 3, H, W), lambda n: (n, 0, 0, 0)),
        ),
        compiler_params=pltpu.CompilerParams(
            dimension_semantics=("parallel",),
            vmem_limit_bytes=_vmem_limit(ws, cap),
        ),
    )(x)


def _run_strip(x, N, H, W, th, out_dtype, cap):
    isize = jnp.dtype(x.dtype).itemsize
    n_strips = H // th
    sb = th // 8        # strip height in 8-row blocks
    hb = H // 8         # image height in 8-row blocks
    ws = _working_set_bytes(3 * th * W * isize + 2 * 3 * 8 * W * isize,
                            3 * th * W * jnp.dtype(out_dtype).itemsize,
                            3 * th * W * 4)
    return pl.pallas_call(
        _grad_strip_kernel,
        out_shape=jax.ShapeDtypeStruct((N, 3, H, W), out_dtype),
        grid_spec=pltpu.PrefetchScalarGridSpec(
            num_scalar_prefetch=0,
            grid=(N, n_strips),
            in_specs=[
                # The strip itself (channels 0..2 only).
                pl.BlockSpec((1, 3, th, W), lambda n, s: (n, 0, s, 0)),
                # 8-row block whose last row is the halo row above the strip
                # (clamped to block 0 for s == 0; zeroed in-kernel there).
                pl.BlockSpec((1, 3, 8, W), lambda n, s: (n, 0, jnp.maximum(s * sb - 1, 0), 0)),
                # 8-row block whose first row is the halo row below the strip
                # (clamped to the last block for the last strip; zeroed in-kernel).
                pl.BlockSpec((1, 3, 8, W), lambda n, s: (n, 0, jnp.minimum((s + 1) * sb, hb - 1), 0)),
            ],
            out_specs=pl.BlockSpec((1, 3, th, W), lambda n, s: (n, 0, s, 0)),
        ),
        compiler_params=pltpu.CompilerParams(
            dimension_semantics=("parallel", "parallel"),
            vmem_limit_bytes=_vmem_limit(ws, cap),
        ),
    )(x, x, x)


def _run_flat(x, N, C, H, W, out_dtype, cap):
    HW = H * W
    # Small-image path only: the wrapper slice (when C > 3) is a tiny one-off
    # copy; the reshape to (N/B, B*3, HW) is a contiguous (metadata) reshape.
    x3 = x[:, :3] if C != 3 else x
    per_img_f32 = 3 * HW * 4
    B = 1
    for d in range(1, N + 1):                      # batch images so blocks are MiB-scale, not KiB
        if N % d == 0 and d * per_img_f32 <= (2 << 20):
            B = d
    xf = x3.reshape(N // B, B * 3, HW)
    isize = jnp.dtype(x.dtype).itemsize
    ws = _working_set_bytes(B * 3 * HW * isize,
                            B * 3 * HW * jnp.dtype(out_dtype).itemsize,
                            B * per_img_f32)
    out = pl.pallas_call(
        functools.partial(_grad_flat_kernel, W=W),
        out_shape=jax.ShapeDtypeStruct((N // B, B * 3, HW), out_dtype),
        grid_spec=pltpu.PrefetchScalarGridSpec(
            num_scalar_prefetch=0,
            grid=(N // B,),
            in_specs=[pl.BlockSpec((1, B * 3, HW), lambda g: (g, 0, 0))],
            out_specs=pl.BlockSpec((1, B * 3, HW), lambda g: (g, 0, 0)),
        ),
        compiler_params=pltpu.CompilerParams(
            dimension_semantics=("parallel",),
            vmem_limit_bytes=_vmem_limit(ws, cap),
        ),
    )(xf)
    return out.reshape(N, 3, H, W)


# --------------------------------------------------------------------------
# Public entry point
# --------------------------------------------------------------------------

def get_gradient_nopadding(x, *, out_dtype=jnp.float32, force_path=None, strip_rows=None):
    """x: (N, C>=3, H, W) any float dtype -> (N, 3, H, W) `out_dtype` (default f32)."""
    N, C, H, W = x.shape
    assert C >= 3, "Get_gradient_nopadding uses channels 0, 1, 2"
    HW = H * W
    isize = jnp.dtype(x.dtype).itemsize
    osize = jnp.dtype(out_dtype).itemsize

    cap = _vmem_capacity_bytes()
    usable = cap - (16 << 20)          # path-gating budget: ~48 MiB on v7x, ~112 MiB on v5e/v6e

    ws_img = _working_set_bytes(3 * HW * isize, 3 * HW * osize, 3 * HW * 4)

    path = force_path
    strip_th = strip_rows
    if path is None:
        if ws_img <= usable:
            if W < 128:
                path = "flat"
            elif N == 1 and H % 8 == 0 and H >= 16:
                # v7x has 2 TensorCores: give single-image inputs a parallel grid
                # axis of extent >= 2 by splitting over H-strips.
                strip_th = _pick_strip_rows(H, W, isize, osize, usable, max_rows=H // 2)
                path = "strip" if strip_th is not None else "image"
            else:
                path = "image"
        elif H % 8 == 0:
            path = "strip"
        else:
            # TODO(synk): image too large for VMEM with H not a multiple of 8 --
            # needs overlapping (Element-offset) strips; fall back to the
            # whole-image path and rely on vmem_limit_bytes for now.
            path = "image"

    if path == "flat":
        return _run_flat(x, N, C, H, W, out_dtype, cap)
    if path == "strip":
        if strip_th is None:
            strip_th = _pick_strip_rows(H, W, isize, osize, usable) or 8
        assert H % strip_th == 0 and strip_th % 8 == 0, \
            "strip_rows must be a multiple of 8 that divides H"
        return _run_strip(x, N, H, W, strip_th, out_dtype, cap)
    return _run_image(x, N, H, W, out_dtype, cap)


# --------------------------------------------------------------------------
# Reference + test
# --------------------------------------------------------------------------

def _reference(x):
    # Pure-JAX reference of the PyTorch forward (conv2d with padding=1).
    x = x[:, :3].astype(jnp.float32)
    xp = jnp.pad(x, ((0, 0), (0, 0), (1, 1), (1, 1)))
    grad_v = xp[:, :, 2:, 1:-1] - xp[:, :, :-2, 1:-1]   # x[i+1, j] - x[i-1, j]
    grad_h = xp[:, :, 1:-1, 2:] - xp[:, :, 1:-1, :-2]   # x[i, j+1] - x[i, j-1]
    return jnp.sqrt(grad_v ** 2 + grad_h ** 2 + 1e-6)


if __name__ == "__main__":
    key = jax.random.PRNGKey(0)
    k1, k2, k3 = jax.random.split(key, 3)

    # 1) Skinny width (W < 128): batched, lane-dense flat path.  C = 4 checks
    #    that only channels 0..2 contribute.
    x1 = jax.random.normal(k1, (2, 4, 16, 16), dtype=jnp.float32)
    o1 = jax.block_until_ready(get_gradient_nopadding(x1))
    assert o1.shape == (2, 3, 16, 16)
    assert jnp.allclose(o1, _reference(x1), atol=1e-5, rtol=1e-5)

    # 2) Lane-aligned width (W = 128): whole-image natural-layout path; the
    #    (1, 3, H, W) BlockSpec DMAs only 3 of the 4 channels.
    x2 = jax.random.normal(k2, (2, 4, 16, 128), dtype=jnp.float32)
    o2 = jax.block_until_ready(get_gradient_nopadding(x2))
    assert jnp.allclose(o2, _reference(x2), atol=1e-5, rtol=1e-5)

    # 3) H-strip path with 1-row halos (used for large frames), forced at a
    #    small shape so both top/bottom edge handling and interior halos run.
    x3 = jax.random.normal(k3, (2, 4, 32, 128), dtype=jnp.float32)
    o3 = jax.block_until_ready(get_gradient_nopadding(x3, force_path="strip", strip_rows=16))
    assert jnp.allclose(o3, _reference(x3), atol=1e-5, rtol=1e-5)

    # 4) Single-image input auto-splits into >= 2 strips (keeps both v7x
    #    TensorCores busy) and still matches the reference.
    x4 = jax.random.normal(key, (1, 3, 32, 128), dtype=jnp.float32)
    o4 = jax.block_until_ready(get_gradient_nopadding(x4))
    assert jnp.allclose(o4, _reference(x4), atol=1e-5, rtol=1e-5)

    print("KERNEL_OK")
</pallas_src>

<mosaic_0001>
module attributes {stable_mosaic.version = 11 : i64} {
  func.func @_grad_flat_kernel(%arg0: i32, %arg1: memref<1x6x256xf32, #tpu.memory_space<vmem>>, %arg2: memref<1x6x256xf32, #tpu.memory_space<vmem>>) attributes {dimension_semantics = [#tpu.dimension_semantics<parallel>], iteration_bounds = array<i64: 1>, scalar_prefetch = 0 : i64, scratch_operands = 0 : i64, tpu.core_type = #tpu.core_type<tc>, window_params = [{transform_indices = @transform_0, window_bounds = array<i64: 1, 6, 256>}, {transform_indices = @transform_1, window_bounds = array<i64: 1, 6, 256>}]} {
    %0 = tpu.iota {dimensions = array<i32: 1>} : vector<1x256xi32>
    %c16_i32 = arith.constant 16 : i32
    %c0_i32 = arith.constant 0 : i32
    %1 = arith.cmpi eq, %c16_i32, %c0_i32 : i32
    %c1_i32 = arith.constant 1 : i32
    %2 = arith.select %1, %c1_i32, %c16_i32 : i32
    %3 = vector.broadcast %2 : i32 to vector<1x256xi32>
    %4 = arith.remsi %0, %3 : vector<1x256xi32>
    %c0_i32_0 = arith.constant 0 : i32
    %5 = vector.broadcast %c0_i32_0 : i32 to vector<1x256xi32>
    %6 = arith.cmpi ne, %4, %5 : vector<1x256xi32>
    %c0_i32_1 = arith.constant 0 : i32
    %7 = vector.broadcast %c0_i32_1 : i32 to vector<1x256xi32>
    %8 = arith.cmpi slt, %4, %7 : vector<1x256xi32>
    %c0_i32_2 = arith.constant 0 : i32
    %9 = arith.cmpi slt, %2, %c0_i32_2 : i32
    %10 = vector.broadcast %9 : i1 to vector<1x256xi1>
    %11 = vector.broadcast %10 : vector<1x256xi1> to vector<1x256xi1>
    %12 = arith.xori %8, %11 : vector<1x256xi1>
    %13 = arith.andi %12, %6 : vector<1x256xi1>
    %14 = vector.broadcast %2 : i32 to vector<1x256xi32>
    %15 = arith.addi %4, %14 : vector<1x256xi32>
    %16 = arith.select %13, %15, %4 : vector<1x256xi1>, vector<1x256xi32>
    %c240_i32 = arith.constant 240 : i32
    %17 = vector.broadcast %c240_i32 : i32 to vector<1x256xi32>
    %18 = arith.cmpi slt, %0, %17 : vector<1x256xi32>
    %19 = arith.extui %18 : vector<1x256xi1> to vector<1x256xi32>
    %20 = arith.sitofp %19 : vector<1x256xi32> to vector<1x256xf32>
    %c16_i32_3 = arith.constant 16 : i32
    %21 = vector.broadcast %c16_i32_3 : i32 to vector<1x256xi32>
    %22 = arith.cmpi sge, %0, %21 : vector<1x256xi32>
    %23 = arith.extui %22 : vector<1x256xi1> to vector<1x256xi32>
    %24 = arith.sitofp %23 : vector<1x256xi32> to vector<1x256xf32>
    %c15_i32 = arith.constant 15 : i32
    %25 = vector.broadcast %c15_i32 : i32 to vector<1x256xi32>
    %26 = arith.cmpi slt, %16, %25 : vector<1x256xi32>
    %27 = arith.extui %26 : vector<1x256xi1> to vector<1x256xi32>
    %28 = arith.sitofp %27 : vector<1x256xi32> to vector<1x256xf32>
    %c0_i32_4 = arith.constant 0 : i32
    %29 = vector.broadcast %c0_i32_4 : i32 to vector<1x256xi32>
    %30 = arith.cmpi sgt, %16, %29 : vector<1x256xi32>
    %31 = arith.extui %30 : vector<1x256xi1> to vector<1x256xi32>
    %32 = arith.sitofp %31 : vector<1x256xi32> to vector<1x256xf32>
    %c0 = arith.constant 0 : index
    %c0_5 = arith.constant 0 : index
    %c0_6 = arith.constant 0 : index
    %33 = vector.load %arg1[%c0, %c0_5, %c0_6] : memref<1x6x256xf32, #tpu.memory_space<vmem>>, vector<1x6x256xf32>
    %34 = vector.shape_cast %33 : vector<1x6x256xf32> to vector<6x256xf32>
    %c240_i32_7 = arith.constant 240 : i32
    %35 = tpu.dynamic_rotate %34 by %c240_i32_7 dim 1 : vector<6x256xf32>, i32 -> vector<6x256xf32>
    %36 = vector.broadcast %20 : vector<1x256xf32> to vector<6x256xf32>
    %37 = arith.mulf %35, %36 : vector<6x256xf32>
    %c16_i32_8 = arith.constant 16 : i32
    %38 = tpu.dynamic_rotate %34 by %c16_i32_8 dim 1 : vector<6x256xf32>, i32 -> vector<6x256xf32>
    %39 = vector.broadcast %24 : vector<1x256xf32> to vector<6x256xf32>
    %40 = arith.mulf %38, %39 : vector<6x256xf32>
    %41 = arith.subf %37, %40 : vector<6x256xf32>
    %c255_i32 = arith.constant 255 : i32
    %42 = tpu.dynamic_rotate %34 by %c255_i32 dim 1 : vector<6x256xf32>, i32 -> vector<6x256xf32>
    %43 = vector.broadcast %28 : vector<1x256xf32> to vector<6x256xf32>
    %44 = arith.mulf %42, %43 : vector<6x256xf32>
    %c1_i32_9 = arith.constant 1 : i32
    %45 = tpu.dynamic_rotate %34 by %c1_i32_9 dim 1 : vector<6x256xf32>, i32 -> vector<6x256xf32>
    %46 = vector.broadcast %32 : vector<1x256xf32> to vector<6x256xf32>
    %47 = arith.mulf %45, %46 : vector<6x256xf32>
    %48 = arith.subf %44, %47 : vector<6x256xf32>
    %49 = arith.mulf %41, %41 : vector<6x256xf32>
    %50 = arith.mulf %48, %48 : vector<6x256xf32>
    %51 = arith.addf %49, %50 : vector<6x256xf32>
    %cst = arith.constant 9.99999997E-7 : f32
    %52 = vector.broadcast %cst : f32 to vector<6x256xf32>
    %53 = arith.addf %51, %52 : vector<6x256xf32>
    %54 = math.sqrt %53 : vector<6x256xf32>
    %c0_10 = arith.constant 0 : index
    %c0_11 = arith.constant 0 : index
    %c0_12 = arith.constant 0 : index
    %55 = vector.load %arg2[%c0_10, %c0_11, %c0_12] : memref<1x6x256xf32, #tpu.memory_space<vmem>>, vector<1x6x256xf32>
    %56 = vector.shape_cast %55 : vector<1x6x256xf32> to vector<6x256xf32>
    %57 = vector.shape_cast %54 : vector<6x256xf32> to vector<1x6x256xf32>
    tpu.vector_store %arg2[%c0_10, %c0_11, %c0_12], %57 {strides = array<i32>} : memref<1x6x256xf32, #tpu.memory_space<vmem>>, vector<1x6x256xf32>,
    return
  }
  func.func @transform_0(%arg0: i32) -> (i32, i32, i32) {
    %c0_i32 = arith.constant 0 : i32
    %c0_i32_0 = arith.constant 0 : i32
    %c0_i32_1 = arith.constant 0 : i32
    return %arg0, %c0_i32, %c0_i32_0 : i32, i32, i32
  }
  func.func @transform_1(%arg0: i32) -> (i32, i32, i32) {
    %c0_i32 = arith.constant 0 : i32
    %c0_i32_0 = arith.constant 0 : i32
    %c0_i32_1 = arith.constant 0 : i32
    return %arg0, %c0_i32, %c0_i32_0 : i32, i32, i32
  }
}

</mosaic_0001>

<llo_original>
// kernel: tpu_custom_call.1
$region0: #{tpu_custom_call.1}
  #allocation0 [shape = 'u32[]', space=smem, size = 0x4, offset = 0x4, fixed_abs, tag = 'smem constant byte address 0x4 - core index']
  #allocation1 [shape = 'u32[144,128]{1,0:T(1,128)}', space=vmem, size = 0x12000, scoped, tag = 'internal scratch']
  %s0 = inlined_call_operand.vmem [shape: f32[1,6,256], index: 0, kind: input, shape index: {}]
  %s1 = inlined_call_operand.vmem [shape: f32[1,6,256], index: 1, kind: output, shape index: {}]
  %s2 = sld [smem:[#allocation0]]
  $region14: #{tpu_custom_call.1} parent=0
    _
  %s4 = ssub.s32 1, %s2
  %s5 = scalar_select 0, %s4, %s2
  // Predicated region
  $region2: #{tpu_custom_call.1} parent=0 // pred_check
    _
  $region3: #{tpu_custom_call.1} parent=0 // pred_check_branch
    %7 = sbr.rel (0) target = $region5
  $region4: #{tpu_custom_call.1} parent=0 // pred_region
    _
  $region5: #{tpu_custom_call.1} parent=0 // pred_fallthru
    _
  %v8 = vlaneseq
  %v9 = vand.u32 %v8, 127
  %v10 = vadd.s32 %v9, 128
  %vm11 = vcmp.lt.s32.totalorder %v9, 0
  %v12 = vsub.s32 0, %v9
  %v13 = vsel %vm11, %v12, %v9
  %v14 = vshrl.u32 %v13, 4
  %v15 = vand.u32 %v13, 15
  %v16 = vsub.s32 0, %v15
  %v17 = vsel %vm11, %v16, %v15
  %vm18 = vcmp.lt.s32.totalorder %v10, 0
  %v19 = vsub.s32 0, %v10
  %v20 = vsel %vm18, %v19, %v10
  %v21 = vshrl.u32 %v20, 4
  %v22 = vand.u32 %v20, 15
  %v23 = vsub.s32 0, %v22
  %v24 = vsel %vm18, %v23, %v22
  %vm25 = vcmp.ne.s32.totalorder %v17, 0
  %vm26 = vcmp.ne.s32.totalorder %v24, 0
  %vm27 = vcmp.lt.s32.totalorder %v17, 0
  %vm28 = vcmp.lt.s32.totalorder %v24, 0
  %vm29 = vmand %vm27, %vm25
  %vm30 = vmand %vm28, %vm26
  %v31 = vadd.s32 %v17, 16
  %v32 = vadd.s32 %v24, 16
  %v33 = vsel %vm29, %v31, %v17
  %v34 = vsel %vm30, %v32, %v24
  %vm35 = vcmp.lt.s32.totalorder %v9, 240
  %vm36 = vcmp.lt.s32.totalorder %v10, 240
  %v37 = vsel %vm35, 1, 0
  %v38 = vsel %vm36, 1, 0
  %v39 = vcvt.s32.f32 %v37
  %v40 = vcvt.s32.f32 %v38
  %vm41 = vcmp.ge.s32.totalorder %v9, 16
  %vm42 = vcmp.ge.s32.totalorder %v10, 16
  %v43 = vsel %vm41, 1, 0
  %v44 = vsel %vm42, 1, 0
  %v45 = vcvt.s32.f32 %v43
  %v46 = vcvt.s32.f32 %v44
  %vm47 = vcmp.lt.s32.totalorder %v33, 15
  %vm48 = vcmp.lt.s32.totalorder %v34, 15
  %v49 = vsel %vm47, 1, 0
  %v50 = vsel %vm48, 1, 0
  %v51 = vcvt.s32.f32 %v49
  %v52 = vcvt.s32.f32 %v50
  %vm53 = vcmp.gt.s32.totalorder %v33, 0
  %vm54 = vcmp.gt.s32.totalorder %v34, 0
  %v55 = vsel %vm53, 1, 0
  %v56 = vsel %vm54, 1, 0
  %v57 = vcvt.s32.f32 %v55
  %v58 = vcvt.s32.f32 %v56
  %v59 = vld [vmem:[%s0] sm:$0x3f]
  %v60 = vld [vmem:[%s0 + $0x8] sm:$0x3f]
  %61 = vrot.lane.b32.xlu0 %v59, 112
  %v62 = vpop.permute.xlu0 %61
  %63 = vrot.lane.b32.xlu0 %v60, 112
  %v64 = vpop.permute.xlu0 %63
  %vm65 = vcmp.lt.s32.totalorder %v9, 112
  %v66 = vsel %vm65, %v62, %v64
  %v67 = vsel %vm65, %v64, %v62
  %v68 = vmul.f32 %v66, %v39
  %v69 = vmul.f32 %v67, %v40
  %70 = vrot.lane.b32.xlu0 %v59, 16
  %v71 = vpop.permute.xlu0 %70
  %72 = vrot.lane.b32.xlu0 %v60, 16
  %v73 = vpop.permute.xlu0 %72
  %vm74 = vcmp.lt.s32.totalorder %v9, 16
  %v75 = vsel %vm74, %v71, %v73
  %v76 = vsel %vm74, %v73, %v71
  %v77 = vmul.f32 %v76, %v45
  %v78 = vmul.f32 %v75, %v46
  %v79 = vsub.f32 %v68, %v77
  %v80 = vsub.f32 %v69, %v78
  %81 = vrot.lane.b32.xlu0 %v59, 127
  %v82 = vpop.permute.xlu0 %81
  %83 = vrot.lane.b32.xlu0 %v60, 127
  %v84 = vpop.permute.xlu0 %83
  %vm85 = vcmp.lt.s32.totalorder %v9, 127
  %v86 = vsel %vm85, %v82, %v84
  %v87 = vsel %vm85, %v84, %v82
  %v88 = vmul.f32 %v86, %v51
  %v89 = vmul.f32 %v87, %v52
  %90 = vrot.lane.b32.xlu0 %v59, 1
  %v91 = vpop.permute.xlu0 %90
  %92 = vrot.lane.b32.xlu0 %v60, 1
  %v93 = vpop.permute.xlu0 %92
  %vm94 = vcmp.lt.s32.totalorder %v9, 1
  %v95 = vsel %vm94, %v91, %v93
  %v96 = vsel %vm94, %v93, %v91
  %v97 = vmul.f32 %v96, %v57
  %v98 = vmul.f32 %v95, %v58
  %v99 = vsub.f32 %v88, %v97
  %v100 = vsub.f32 %v89, %v98
  %v101 = vmul.f32 %v79, %v79
  %v102 = vmul.f32 %v80, %v80
  %v103 = vmul.f32 %v99, %v99
  %v104 = vmul.f32 %v100, %v100
  %v105 = vadd.f32 %v101, %v103
  %v106 = vadd.f32 %v102, %v104
  %v107 = vadd.f32 %v105, 1e-06
  %v108 = vadd.f32 %v106, 1e-06
  %v109 = vrsqrt.pop %v107
  %v110 = vmul.f32 %v107, %v109
  %vm111 = vcmp.eq.f32.partialorder %v107, inf
  %v112 = vsel %vm111, %v107, %v110
  %vm113 = vcmp.eq.f32.partialorder %v107, 0.0
  %v114 = vand.u32 %v107, 2147483648
  %v115 = vsel %vm113, %v114, %v112
  %v116 = vrsqrt.pop %v108
  %v117 = vmul.f32 %v108, %v116
  %vm118 = vcmp.eq.f32.partialorder %v108, inf
  %v119 = vsel %vm118, %v108, %v117
  %vm120 = vcmp.eq.f32.partialorder %v108, 0.0
  %v121 = vand.u32 %v108, 2147483648
  %v122 = vsel %vm120, %v121, %v119
  %123 = vst [vmem:[%s1] sm:$0x3f] %v115
  %124 = vst [vmem:[%s1 + $0x8] sm:$0x3f] %v122
  // Predicated region
  $region6: #{tpu_custom_call.1} parent=0 // pred_check
    _
  $region7: #{tpu_custom_call.1} parent=0 // pred_check_branch
    %126 = sbr.rel (0) target = $region9
  $region8: #{tpu_custom_call.1} parent=0 // pred_region
    _
  $region9: #{tpu_custom_call.1} parent=0 // pred_fallthru
    _
  // Predicated region
  $region10: #{tpu_custom_call.1} parent=0 // pred_check
    _
  $region11: #{tpu_custom_call.1} parent=0 // pred_check_branch
    %128 = sbr.rel (0) target = $region13
  $region12: #{tpu_custom_call.1} parent=0 // pred_region
    _
  $region13: #{tpu_custom_call.1} parent=0 // pred_fallthru
    _

</llo_original>
